<compile_context>
chip_gen: v6e
topology: v6e:2x2x1
jax: 0.10.0
libtpu: 0.0.40
codegen_flags: <defaults>
</compile_context>

<pallas_src>
import functools
import math

import jax
import jax.numpy as jnp
from jax.experimental import pallas as pl
from jax.experimental.pallas import tpu as pltpu


def _hard_dice_kernel(o_ref, t_ref, out_ref, acc_i, acc_h, acc_t, *,
                      C, TS, LANE, HW, threshold, needs_mask):
    s = pl.program_id(1)

    @pl.when(s == 0)
    def _():
        acc_i[...] = jnp.zeros_like(acc_i)
        acc_h[...] = jnp.zeros_like(acc_h)
        acc_t[...] = jnp.zeros_like(acc_t)

    # ---- pass 1: channel-wise max (unrolled elementwise, VPU) -------------
    m = o_ref[0, 0].astype(jnp.float32)
    for c in range(1, C):
        m = jnp.maximum(m, o_ref[0, c].astype(jnp.float32))

    # ---- pass 2: sum_c exp(x_c - m)  (EUP exp + VPU add) ------------------
    se = jnp.exp(o_ref[0, 0].astype(jnp.float32) - m)
    for c in range(1, C):
        se = se + jnp.exp(o_ref[0, c].astype(jnp.float32) - m)

    # softmax(x)_c > thr  <=>  x_c > m + log(se) + log(thr)   (thr > 0)
    # (divide-free; results can differ from the reference only at exact
    #  floating-point ties on the decision boundary)
    if threshold > 0.0:
        tcol = m + jnp.log(se) + float(math.log(threshold))
    else:
        # softmax output is strictly positive -> everything passes
        tcol = jnp.full_like(m, -jnp.inf)

    # ---- pass 3: threshold + per-element partial sums (VPU only) ----------
    inter = jnp.zeros((TS, LANE), jnp.float32)
    hard = jnp.zeros((TS, LANE), jnp.float32)
    tgt = jnp.zeros((TS, LANE), jnp.float32)
    for c in range(C):
        hc = (o_ref[0, c].astype(jnp.float32) > tcol).astype(jnp.float32)
        tc = (t_ref[0, c] == 1).astype(jnp.float32)
        hard = hard + hc
        tgt = tgt + tc
        inter = inter + hc * tc

    if needs_mask:
        # mask out spatial padding (only emitted when HW was padded)
        row = jax.lax.broadcasted_iota(jnp.int32, (TS, LANE), 0)
        lane = jax.lax.broadcasted_iota(jnp.int32, (TS, LANE), 1)
        gpos = (s * TS + row) * LANE + lane
        valid = (gpos < HW).astype(jnp.float32)
        hard = hard * valid
        tgt = tgt * valid
        inter = inter * valid

    acc_i[...] += inter
    acc_h[...] += hard
    acc_t[...] += tgt

    # ---- finalize this batch item: reduce sublanes once, write (3, 128) ---
    @pl.when(s == pl.num_programs(1) - 1)
    def _():
        out_ref[0, 0:1, :] = jnp.sum(acc_i[...], axis=0, keepdims=True)
        out_ref[0, 1:2, :] = jnp.sum(acc_h[...], axis=0, keepdims=True)
        out_ref[0, 2:3, :] = jnp.sum(acc_t[...], axis=0, keepdims=True)


def hard_dice(outputs, targets, *, threshold=0.5, deduct_intersection=False):
    """outputs, targets: (N, C, H, W) in any dtype. Returns scalar f32 hard-dice."""
    N, C, H, W = outputs.shape
    assert targets.shape == outputs.shape
    eps = 1e-10
    LANE = 128
    HW = H * W

    o = outputs.reshape(N, C, HW)
    t = targets.reshape(N, C, HW)              # keep native dtype (no f32 cast)

    hw128 = -(-HW // LANE)                     # ceil(HW / 128)

    # spatial chunk size (in 128-lane rows): target ~1 MiB per input block so
    # 2 inputs x 2 pipeline buffers + scratch stay well inside VMEM on all gens
    itemsize = max(jnp.dtype(outputs.dtype).itemsize,
                   jnp.dtype(targets.dtype).itemsize)
    ts = max(1, (1 << 20) // (C * LANE * itemsize))
    if ts >= hw128:
        ts = hw128
        hw128_pad = hw128
    else:
        ts = max(8, (ts // 8) * 8)             # sublane-aligned partial tile
        if ts >= hw128:
            ts = hw128
            hw128_pad = hw128
        else:
            hw128_pad = -(-hw128 // ts) * ts

    HW_pad = hw128_pad * LANE
    if HW_pad != HW:
        pad = HW_pad - HW
        o = jnp.pad(o, ((0, 0), (0, 0), (0, pad)))
        t = jnp.pad(t, ((0, 0), (0, 0), (0, pad)))
    o = o.reshape(N, C, hw128_pad, LANE)
    t = t.reshape(N, C, hw128_pad, LANE)

    num_s = hw128_pad // ts

    kernel = functools.partial(
        _hard_dice_kernel,
        C=C, TS=ts, LANE=LANE, HW=HW,
        threshold=float(threshold),
        needs_mask=(HW_pad != HW),
    )

    partial_sums = pl.pallas_call(
        kernel,
        out_shape=jax.ShapeDtypeStruct((N, 3, LANE), jnp.float32),
        grid_spec=pltpu.PrefetchScalarGridSpec(
            num_scalar_prefetch=0,
            grid=(N, num_s),
            in_specs=[
                pl.BlockSpec((1, C, ts, LANE), lambda n, s: (n, 0, s, 0)),
                pl.BlockSpec((1, C, ts, LANE), lambda n, s: (n, 0, s, 0)),
            ],
            out_specs=pl.BlockSpec((1, 3, LANE), lambda n, s: (n, 0, 0)),
            scratch_shapes=[pltpu.VMEM((ts, LANE), jnp.float32)] * 3,
        ),
        compiler_params=pltpu.CompilerParams(
            dimension_semantics=("parallel", "arbitrary"),
            vmem_limit_bytes=32 * 1024 * 1024,
        ),
    )(o, t)

    # final tiny reduction + log/clamp in plain JAX (keeps grid axis parallel)
    sums = jnp.sum(partial_sums, axis=(0, 2))  # (3,)
    intersection = sums[0]
    union = sums[1] + sums[2]
    if deduct_intersection:
        union = union - intersection
    union = union + eps
    hd = 1.0 + jnp.log(2.0 * intersection / union)
    return jnp.clip(hd, 0.0, 1.0)


def _hard_dice_ref(outputs, targets, *, threshold=0.5, deduct_intersection=False):
    eps = 1e-10
    dice_target = (targets == 1).astype(jnp.float32)
    dice_output = jax.nn.softmax(outputs.astype(jnp.float32), axis=1)
    hard_output = (dice_output > threshold).astype(jnp.float32)
    intersection = jnp.sum(hard_output * dice_target)
    if deduct_intersection:
        union = jnp.sum(hard_output) + jnp.sum(dice_target) - intersection + eps
    else:
        union = jnp.sum(hard_output) + jnp.sum(dice_target) + eps
    return jnp.clip(1.0 + jnp.log(2.0 * intersection / union), 0.0, 1.0)


if __name__ == "__main__":
    key = jax.random.PRNGKey(0)
    k1, k2 = jax.random.split(key)

    N, C, H, W = 2, 4, 16, 16
    # logits (scaled so some softmax probs exceed the 0.5 threshold)
    outputs = 4.0 * jax.random.normal(k1, (N, C, H, W), dtype=jnp.float32)
    # binary targets in {0, 1}
    targets = (jax.random.uniform(k2, (N, C, H, W)) > 0.5).astype(jnp.float32)

    result = hard_dice(outputs, targets, threshold=0.5, deduct_intersection=False)
    result = jax.block_until_ready(result)

    ref = _hard_dice_ref(outputs, targets, threshold=0.5, deduct_intersection=False)
    assert jnp.allclose(result, ref, atol=1e-5, rtol=1e-5), (result, ref)

    # also exercise the deduct_intersection branch
    r2 = jax.block_until_ready(
        hard_dice(outputs, targets, threshold=0.5, deduct_intersection=True))
    ref2 = _hard_dice_ref(outputs, targets, threshold=0.5, deduct_intersection=True)
    assert jnp.allclose(r2, ref2, atol=1e-5, rtol=1e-5), (r2, ref2)

    print("KERNEL_OK")
</pallas_src>

<mosaic_0001>
module attributes {stable_mosaic.version = 11 : i64} {
  func.func @_hard_dice_kernel(%arg0: i32, %arg1: i32, %arg2: memref<1x4x2x128xf32, #tpu.memory_space<vmem>>, %arg3: memref<1x4x2x128xf32, #tpu.memory_space<vmem>>, %arg4: memref<1x3x128xf32, #tpu.memory_space<vmem>>, %arg5: memref<2x128xf32, #tpu.memory_space<vmem>>, %arg6: memref<2x128xf32, #tpu.memory_space<vmem>>, %arg7: memref<2x128xf32, #tpu.memory_space<vmem>>) attributes {dimension_semantics = [#tpu.dimension_semantics<parallel>, #tpu.dimension_semantics<arbitrary>], iteration_bounds = array<i64: 2, 1>, scalar_prefetch = 0 : i64, scratch_operands = 3 : i64, tpu.core_type = #tpu.core_type<tc>, window_params = [{transform_indices = @transform_0, window_bounds = array<i64: 1, 4, 2, 128>}, {transform_indices = @transform_1, window_bounds = array<i64: 1, 4, 2, 128>}, {transform_indices = @transform_2, window_bounds = array<i64: 1, 3, 128>}]} {
    %c0_i32 = arith.constant 0 : i32
    %0 = arith.cmpi eq, %arg1, %c0_i32 : i32
    %1 = arith.extui %0 : i1 to i32
    %c0_i32_0 = arith.constant 0 : i32
    %2 = arith.cmpi ne, %1, %c0_i32_0 : i32
    scf.if %2 {
      %cst_82 = arith.constant 0.000000e+00 : f32
      %112 = vector.broadcast %cst_82 : f32 to vector<2x128xf32>
      %c0_83 = arith.constant 0 : index
      %c0_84 = arith.constant 0 : index
      %113 = vector.load %arg5[%c0_83, %c0_84] : memref<2x128xf32, #tpu.memory_space<vmem>>, vector<2x128xf32>
      tpu.vector_store %arg5[%c0_83, %c0_84], %112 {strides = array<i32>} : memref<2x128xf32, #tpu.memory_space<vmem>>, vector<2x128xf32>,
      %cst_85 = arith.constant 0.000000e+00 : f32
      %114 = vector.broadcast %cst_85 : f32 to vector<2x128xf32>
      %c0_86 = arith.constant 0 : index
      %c0_87 = arith.constant 0 : index
      %115 = vector.load %arg6[%c0_86, %c0_87] : memref<2x128xf32, #tpu.memory_space<vmem>>, vector<2x128xf32>
      tpu.vector_store %arg6[%c0_86, %c0_87], %114 {strides = array<i32>} : memref<2x128xf32, #tpu.memory_space<vmem>>, vector<2x128xf32>,
      %cst_88 = arith.constant 0.000000e+00 : f32
      %116 = vector.broadcast %cst_88 : f32 to vector<2x128xf32>
      %c0_89 = arith.constant 0 : index
      %c0_90 = arith.constant 0 : index
      %117 = vector.load %arg7[%c0_89, %c0_90] : memref<2x128xf32, #tpu.memory_space<vmem>>, vector<2x128xf32>
      tpu.vector_store %arg7[%c0_89, %c0_90], %116 {strides = array<i32>} : memref<2x128xf32, #tpu.memory_space<vmem>>, vector<2x128xf32>,
    } else {
    }
    %c0 = arith.constant 0 : index
    %c0_1 = arith.constant 0 : index
    %c0_2 = arith.constant 0 : index
    %c0_3 = arith.constant 0 : index
    %3 = vector.load %arg2[%c0, %c0_1, %c0_2, %c0_3] : memref<1x4x2x128xf32, #tpu.memory_space<vmem>>, vector<1x1x2x128xf32>
    %4 = vector.shape_cast %3 : vector<1x1x2x128xf32> to vector<2x128xf32>
    %c0_4 = arith.constant 0 : index
    %c1 = arith.constant 1 : index
    %c0_5 = arith.constant 0 : index
    %c0_6 = arith.constant 0 : index
    %5 = vector.load %arg2[%c0_4, %c1, %c0_5, %c0_6] : memref<1x4x2x128xf32, #tpu.memory_space<vmem>>, vector<1x1x2x128xf32>
    %6 = vector.shape_cast %5 : vector<1x1x2x128xf32> to vector<2x128xf32>
    %7 = arith.maximumf %4, %6 : vector<2x128xf32>
    %c0_7 = arith.constant 0 : index
    %c2 = arith.constant 2 : index
    %c0_8 = arith.constant 0 : index
    %c0_9 = arith.constant 0 : index
    %8 = vector.load %arg2[%c0_7, %c2, %c0_8, %c0_9] : memref<1x4x2x128xf32, #tpu.memory_space<vmem>>, vector<1x1x2x128xf32>
    %9 = vector.shape_cast %8 : vector<1x1x2x128xf32> to vector<2x128xf32>
    %10 = arith.maximumf %7, %9 : vector<2x128xf32>
    %c0_10 = arith.constant 0 : index
    %c3 = arith.constant 3 : index
    %c0_11 = arith.constant 0 : index
    %c0_12 = arith.constant 0 : index
    %11 = vector.load %arg2[%c0_10, %c3, %c0_11, %c0_12] : memref<1x4x2x128xf32, #tpu.memory_space<vmem>>, vector<1x1x2x128xf32>
    %12 = vector.shape_cast %11 : vector<1x1x2x128xf32> to vector<2x128xf32>
    %13 = arith.maximumf %10, %12 : vector<2x128xf32>
    %c0_13 = arith.constant 0 : index
    %c0_14 = arith.constant 0 : index
    %c0_15 = arith.constant 0 : index
    %c0_16 = arith.constant 0 : index
    %14 = vector.load %arg2[%c0_13, %c0_14, %c0_15, %c0_16] : memref<1x4x2x128xf32, #tpu.memory_space<vmem>>, vector<1x1x2x128xf32>
    %15 = vector.shape_cast %14 : vector<1x1x2x128xf32> to vector<2x128xf32>
    %16 = arith.subf %15, %13 : vector<2x128xf32>
    %17 = math.exp %16 : vector<2x128xf32>
    %c0_17 = arith.constant 0 : index
    %c1_18 = arith.constant 1 : index
    %c0_19 = arith.constant 0 : index
    %c0_20 = arith.constant 0 : index
    %18 = vector.load %arg2[%c0_17, %c1_18, %c0_19, %c0_20] : memref<1x4x2x128xf32, #tpu.memory_space<vmem>>, vector<1x1x2x128xf32>
    %19 = vector.shape_cast %18 : vector<1x1x2x128xf32> to vector<2x128xf32>
    %20 = arith.subf %19, %13 : vector<2x128xf32>
    %21 = math.exp %20 : vector<2x128xf32>
    %22 = arith.addf %17, %21 : vector<2x128xf32>
    %c0_21 = arith.constant 0 : index
    %c2_22 = arith.constant 2 : index
    %c0_23 = arith.constant 0 : index
    %c0_24 = arith.constant 0 : index
    %23 = vector.load %arg2[%c0_21, %c2_22, %c0_23, %c0_24] : memref<1x4x2x128xf32, #tpu.memory_space<vmem>>, vector<1x1x2x128xf32>
    %24 = vector.shape_cast %23 : vector<1x1x2x128xf32> to vector<2x128xf32>
    %25 = arith.subf %24, %13 : vector<2x128xf32>
    %26 = math.exp %25 : vector<2x128xf32>
    %27 = arith.addf %22, %26 : vector<2x128xf32>
    %c0_25 = arith.constant 0 : index
    %c3_26 = arith.constant 3 : index
    %c0_27 = arith.constant 0 : index
    %c0_28 = arith.constant 0 : index
    %28 = vector.load %arg2[%c0_25, %c3_26, %c0_27, %c0_28] : memref<1x4x2x128xf32, #tpu.memory_space<vmem>>, vector<1x1x2x128xf32>
    %29 = vector.shape_cast %28 : vector<1x1x2x128xf32> to vector<2x128xf32>
    %30 = arith.subf %29, %13 : vector<2x128xf32>
    %31 = math.exp %30 : vector<2x128xf32>
    %32 = arith.addf %27, %31 : vector<2x128xf32>
    %33 = math.log %32 : vector<2x128xf32>
    %34 = arith.addf %13, %33 : vector<2x128xf32>
    %cst = arith.constant -0.693147182 : f32
    %35 = vector.broadcast %cst : f32 to vector<2x128xf32>
    %36 = arith.addf %34, %35 : vector<2x128xf32>
    %cst_29 = arith.constant 0.000000e+00 : f32
    %37 = vector.broadcast %cst_29 : f32 to vector<2x128xf32>
    %cst_30 = arith.constant 0.000000e+00 : f32
    %38 = vector.broadcast %cst_30 : f32 to vector<2x128xf32>
    %cst_31 = arith.constant 0.000000e+00 : f32
    %39 = vector.broadcast %cst_31 : f32 to vector<2x128xf32>
    %c0_32 = arith.constant 0 : index
    %c0_33 = arith.constant 0 : index
    %c0_34 = arith.constant 0 : index
    %c0_35 = arith.constant 0 : index
    %40 = vector.load %arg2[%c0_32, %c0_33, %c0_34, %c0_35] : memref<1x4x2x128xf32, #tpu.memory_space<vmem>>, vector<1x1x2x128xf32>
    %41 = vector.shape_cast %40 : vector<1x1x2x128xf32> to vector<2x128xf32>
    %42 = arith.cmpf ogt, %41, %36 : vector<2x128xf32>
    %43 = arith.extui %42 : vector<2x128xi1> to vector<2x128xi32>
    %44 = arith.sitofp %43 : vector<2x128xi32> to vector<2x128xf32>
    %c0_36 = arith.constant 0 : index
    %c0_37 = arith.constant 0 : index
    %c0_38 = arith.constant 0 : index
    %c0_39 = arith.constant 0 : index
    %45 = vector.load %arg3[%c0_36, %c0_37, %c0_38, %c0_39] : memref<1x4x2x128xf32, #tpu.memory_space<vmem>>, vector<1x1x2x128xf32>
    %46 = vector.shape_cast %45 : vector<1x1x2x128xf32> to vector<2x128xf32>
    %cst_40 = arith.constant 1.000000e+00 : f32
    %47 = vector.broadcast %cst_40 : f32 to vector<2x128xf32>
    %48 = arith.cmpf oeq, %46, %47 : vector<2x128xf32>
    %49 = arith.extui %48 : vector<2x128xi1> to vector<2x128xi32>
    %50 = arith.sitofp %49 : vector<2x128xi32> to vector<2x128xf32>
    %51 = arith.addf %38, %44 : vector<2x128xf32>
    %52 = arith.addf %39, %50 : vector<2x128xf32>
    %53 = arith.mulf %44, %50 : vector<2x128xf32>
    %54 = arith.addf %37, %53 : vector<2x128xf32>
    %c0_41 = arith.constant 0 : index
    %c1_42 = arith.constant 1 : index
    %c0_43 = arith.constant 0 : index
    %c0_44 = arith.constant 0 : index
    %55 = vector.load %arg2[%c0_41, %c1_42, %c0_43, %c0_44] : memref<1x4x2x128xf32, #tpu.memory_space<vmem>>, vector<1x1x2x128xf32>
    %56 = vector.shape_cast %55 : vector<1x1x2x128xf32> to vector<2x128xf32>
    %57 = arith.cmpf ogt, %56, %36 : vector<2x128xf32>
    %58 = arith.extui %57 : vector<2x128xi1> to vector<2x128xi32>
    %59 = arith.sitofp %58 : vector<2x128xi32> to vector<2x128xf32>
    %c0_45 = arith.constant 0 : index
    %c1_46 = arith.constant 1 : index
    %c0_47 = arith.constant 0 : index
    %c0_48 = arith.constant 0 : index
    %60 = vector.load %arg3[%c0_45, %c1_46, %c0_47, %c0_48] : memref<1x4x2x128xf32, #tpu.memory_space<vmem>>, vector<1x1x2x128xf32>
    %61 = vector.shape_cast %60 : vector<1x1x2x128xf32> to vector<2x128xf32>
    %cst_49 = arith.constant 1.000000e+00 : f32
    %62 = vector.broadcast %cst_49 : f32 to vector<2x128xf32>
    %63 = arith.cmpf oeq, %61, %62 : vector<2x128xf32>
    %64 = arith.extui %63 : vector<2x128xi1> to vector<2x128xi32>
    %65 = arith.sitofp %64 : vector<2x128xi32> to vector<2x128xf32>
    %66 = arith.addf %51, %59 : vector<2x128xf32>
    %67 = arith.addf %52, %65 : vector<2x128xf32>
    %68 = arith.mulf %59, %65 : vector<2x128xf32>
    %69 = arith.addf %54, %68 : vector<2x128xf32>
    %c0_50 = arith.constant 0 : index
    %c2_51 = arith.constant 2 : index
    %c0_52 = arith.constant 0 : index
    %c0_53 = arith.constant 0 : index
    %70 = vector.load %arg2[%c0_50, %c2_51, %c0_52, %c0_53] : memref<1x4x2x128xf32, #tpu.memory_space<vmem>>, vector<1x1x2x128xf32>
    %71 = vector.shape_cast %70 : vector<1x1x2x128xf32> to vector<2x128xf32>
    %72 = arith.cmpf ogt, %71, %36 : vector<2x128xf32>
    %73 = arith.extui %72 : vector<2x128xi1> to vector<2x128xi32>
    %74 = arith.sitofp %73 : vector<2x128xi32> to vector<2x128xf32>
    %c0_54 = arith.constant 0 : index
    %c2_55 = arith.constant 2 : index
    %c0_56 = arith.constant 0 : index
    %c0_57 = arith.constant 0 : index
    %75 = vector.load %arg3[%c0_54, %c2_55, %c0_56, %c0_57] : memref<1x4x2x128xf32, #tpu.memory_space<vmem>>, vector<1x1x2x128xf32>
    %76 = vector.shape_cast %75 : vector<1x1x2x128xf32> to vector<2x128xf32>
    %cst_58 = arith.constant 1.000000e+00 : f32
    %77 = vector.broadcast %cst_58 : f32 to vector<2x128xf32>
    %78 = arith.cmpf oeq, %76, %77 : vector<2x128xf32>
    %79 = arith.extui %78 : vector<2x128xi1> to vector<2x128xi32>
    %80 = arith.sitofp %79 : vector<2x128xi32> to vector<2x128xf32>
    %81 = arith.addf %66, %74 : vector<2x128xf32>
    %82 = arith.addf %67, %80 : vector<2x128xf32>
    %83 = arith.mulf %74, %80 : vector<2x128xf32>
    %84 = arith.addf %69, %83 : vector<2x128xf32>
    %c0_59 = arith.constant 0 : index
    %c3_60 = arith.constant 3 : index
    %c0_61 = arith.constant 0 : index
    %c0_62 = arith.constant 0 : index
    %85 = vector.load %arg2[%c0_59, %c3_60, %c0_61, %c0_62] : memref<1x4x2x128xf32, #tpu.memory_space<vmem>>, vector<1x1x2x128xf32>
    %86 = vector.shape_cast %85 : vector<1x1x2x128xf32> to vector<2x128xf32>
    %87 = arith.cmpf ogt, %86, %36 : vector<2x128xf32>
    %88 = arith.extui %87 : vector<2x128xi1> to vector<2x128xi32>
    %89 = arith.sitofp %88 : vector<2x128xi32> to vector<2x128xf32>
    %c0_63 = arith.constant 0 : index
    %c3_64 = arith.constant 3 : index
    %c0_65 = arith.constant 0 : index
    %c0_66 = arith.constant 0 : index
    %90 = vector.load %arg3[%c0_63, %c3_64, %c0_65, %c0_66] : memref<1x4x2x128xf32, #tpu.memory_space<vmem>>, vector<1x1x2x128xf32>
    %91 = vector.shape_cast %90 : vector<1x1x2x128xf32> to vector<2x128xf32>
    %cst_67 = arith.constant 1.000000e+00 : f32
    %92 = vector.broadcast %cst_67 : f32 to vector<2x128xf32>
    %93 = arith.cmpf oeq, %91, %92 : vector<2x128xf32>
    %94 = arith.extui %93 : vector<2x128xi1> to vector<2x128xi32>
    %95 = arith.sitofp %94 : vector<2x128xi32> to vector<2x128xf32>
    %96 = arith.addf %81, %89 : vector<2x128xf32>
    %97 = arith.addf %82, %95 : vector<2x128xf32>
    %98 = arith.mulf %89, %95 : vector<2x128xf32>
    %99 = arith.addf %84, %98 : vector<2x128xf32>
    %c0_68 = arith.constant 0 : index
    %c0_69 = arith.constant 0 : index
    %100 = vector.load %arg5[%c0_68, %c0_69] : memref<2x128xf32, #tpu.memory_space<vmem>>, vector<2x128xf32>
    %101 = arith.addf %100, %99 : vector<2x128xf32>
    %c0_70 = arith.constant 0 : index
    %c0_71 = arith.constant 0 : index
    %102 = vector.load %arg5[%c0_70, %c0_71] : memref<2x128xf32, #tpu.memory_space<vmem>>, vector<2x128xf32>
    tpu.vector_store %arg5[%c0_70, %c0_71], %101 {strides = array<i32>} : memref<2x128xf32, #tpu.memory_space<vmem>>, vector<2x128xf32>,
    %c0_72 = arith.constant 0 : index
    %c0_73 = arith.constant 0 : index
    %103 = vector.load %arg6[%c0_72, %c0_73] : memref<2x128xf32, #tpu.memory_space<vmem>>, vector<2x128xf32>
    %104 = arith.addf %103, %96 : vector<2x128xf32>
    %c0_74 = arith.constant 0 : index
    %c0_75 = arith.constant 0 : index
    %105 = vector.load %arg6[%c0_74, %c0_75] : memref<2x128xf32, #tpu.memory_space<vmem>>, vector<2x128xf32>
    tpu.vector_store %arg6[%c0_74, %c0_75], %104 {strides = array<i32>} : memref<2x128xf32, #tpu.memory_space<vmem>>, vector<2x128xf32>,
    %c0_76 = arith.constant 0 : index
    %c0_77 = arith.constant 0 : index
    %106 = vector.load %arg7[%c0_76, %c0_77] : memref<2x128xf32, #tpu.memory_space<vmem>>, vector<2x128xf32>
    %107 = arith.addf %106, %97 : vector<2x128xf32>
    %c0_78 = arith.constant 0 : index
    %c0_79 = arith.constant 0 : index
    %108 = vector.load %arg7[%c0_78, %c0_79] : memref<2x128xf32, #tpu.memory_space<vmem>>, vector<2x128xf32>
    tpu.vector_store %arg7[%c0_78, %c0_79], %107 {strides = array<i32>} : memref<2x128xf32, #tpu.memory_space<vmem>>, vector<2x128xf32>,
    %c0_i32_80 = arith.constant 0 : i32
    %109 = arith.cmpi eq, %arg1, %c0_i32_80 : i32
    %110 = arith.extui %109 : i1 to i32
    %c0_i32_81 = arith.constant 0 : i32
    %111 = arith.cmpi ne, %110, %c0_i32_81 : i32
    scf.if %111 {
      %c0_82 = arith.constant 0 : index
      %c0_83 = arith.constant 0 : index
      %112 = vector.load %arg5[%c0_82, %c0_83] : memref<2x128xf32, #tpu.memory_space<vmem>>, vector<2x128xf32>
      %cst_84 = arith.constant dense<0.000000e+00> : vector<128xf32>
      %113 = vector.multi_reduction <add>, %112, %cst_84 [0] : vector<2x128xf32> to vector<128xf32>
      %114 = vector.shape_cast %113 : vector<128xf32> to vector<1x128xf32>
      %c0_85 = arith.constant 0 : index
      %c0_86 = arith.constant 0 : index
      %c0_87 = arith.constant 0 : index
      %115 = vector.load %arg4[%c0_85, %c0_86, %c0_87] : memref<1x3x128xf32, #tpu.memory_space<vmem>>, vector<1x1x128xf32>
      %116 = vector.shape_cast %115 : vector<1x1x128xf32> to vector<1x128xf32>
      %117 = vector.shape_cast %114 : vector<1x128xf32> to vector<1x1x128xf32>
      tpu.vector_store %arg4[%c0_85, %c0_86, %c0_87], %117 {strides = array<i32>} : memref<1x3x128xf32, #tpu.memory_space<vmem>>, vector<1x1x128xf32>,
      %c0_88 = arith.constant 0 : index
      %c0_89 = arith.constant 0 : index
      %118 = vector.load %arg6[%c0_88, %c0_89] : memref<2x128xf32, #tpu.memory_space<vmem>>, vector<2x128xf32>
      %cst_90 = arith.constant dense<0.000000e+00> : vector<128xf32>
      %119 = vector.multi_reduction <add>, %118, %cst_90 [0] : vector<2x128xf32> to vector<128xf32>
      %120 = vector.shape_cast %119 : vector<128xf32> to vector<1x128xf32>
      %c0_91 = arith.constant 0 : index
      %c1_92 = arith.constant 1 : index
      %c0_93 = arith.constant 0 : index
      %121 = vector.load %arg4[%c0_91, %c1_92, %c0_93] : memref<1x3x128xf32, #tpu.memory_space<vmem>>, vector<1x1x128xf32>
      %122 = vector.shape_cast %121 : vector<1x1x128xf32> to vector<1x128xf32>
      %123 = vector.shape_cast %120 : vector<1x128xf32> to vector<1x1x128xf32>
      tpu.vector_store %arg4[%c0_91, %c1_92, %c0_93], %123 {strides = array<i32>} : memref<1x3x128xf32, #tpu.memory_space<vmem>>, vector<1x1x128xf32>,
      %c0_94 = arith.constant 0 : index
      %c0_95 = arith.constant 0 : index
      %124 = vector.load %arg7[%c0_94, %c0_95] : memref<2x128xf32, #tpu.memory_space<vmem>>, vector<2x128xf32>
      %cst_96 = arith.constant dense<0.000000e+00> : vector<128xf32>
      %125 = vector.multi_reduction <add>, %124, %cst_96 [0] : vector<2x128xf32> to vector<128xf32>
      %126 = vector.shape_cast %125 : vector<128xf32> to vector<1x128xf32>
      %c0_97 = arith.constant 0 : index
      %c2_98 = arith.constant 2 : index
      %c0_99 = arith.constant 0 : index
      %127 = vector.load %arg4[%c0_97, %c2_98, %c0_99] : memref<1x3x128xf32, #tpu.memory_space<vmem>>, vector<1x1x128xf32>
      %128 = vector.shape_cast %127 : vector<1x1x128xf32> to vector<1x128xf32>
      %129 = vector.shape_cast %126 : vector<1x128xf32> to vector<1x1x128xf32>
      tpu.vector_store %arg4[%c0_97, %c2_98, %c0_99], %129 {strides = array<i32>} : memref<1x3x128xf32, #tpu.memory_space<vmem>>, vector<1x1x128xf32>,
    } else {
    }
    return
  }
  func.func @transform_0(%arg0: i32, %arg1: i32) -> (i32, i32, i32, i32) {
    %c0_i32 = arith.constant 0 : i32
    %c0_i32_0 = arith.constant 0 : i32
    %c0_i32_1 = arith.constant 0 : i32
    return %arg0, %c0_i32, %arg1, %c0_i32_0 : i32, i32, i32, i32
  }
  func.func @transform_1(%arg0: i32, %arg1: i32) -> (i32, i32, i32, i32) {
    %c0_i32 = arith.constant 0 : i32
    %c0_i32_0 = arith.constant 0 : i32
    %c0_i32_1 = arith.constant 0 : i32
    return %arg0, %c0_i32, %arg1, %c0_i32_0 : i32, i32, i32, i32
  }
  func.func @transform_2(%arg0: i32, %arg1: i32) -> (i32, i32, i32) {
    %c0_i32 = arith.constant 0 : i32
    %c0_i32_0 = arith.constant 0 : i32
    %c0_i32_1 = arith.constant 0 : i32
    return %arg0, %c0_i32, %c0_i32_0 : i32, i32, i32
  }
}

</mosaic_0001>

<llo_original>
// kernel: tpu_custom_call.1
$region0: #{tpu_custom_call.1}
  #allocation0 [shape = 'u32[]', space=smem, size = 0x4, offset = 0x4, fixed_abs, tag = 'smem constant byte address 0x4 - core index']
  #allocation1 [shape = 'u32[144,128]{1,0:T(1,128)}', space=vmem, size = 0x12000, scoped, tag = 'internal scratch']
  #allocation2 [shape = 'f32[2,128]{1,0:T(2,128)}', space=vmem, size = 0x400, scoped, tag = 'scratch operand']
  #allocation3 [shape = 'f32[2,128]{1,0:T(2,128)}', space=vmem, size = 0x400, scoped, tag = 'scratch operand']
  #allocation4 [shape = 'f32[2,128]{1,0:T(2,128)}', space=vmem, size = 0x400, scoped, tag = 'scratch operand']
  %s0 = inlined_call_operand.hbm [shape: f32[2,4,2,128], index: 0, kind: input, shape index: {}]
  %s1 = inlined_call_operand.hbm [shape: f32[2,4,2,128], index: 1, kind: input, shape index: {}]
  %s2 = inlined_call_operand.vmem [shape: f32[2,3,128], index: 2, kind: output, shape index: {}]
  %s3 = sld [smem:[#allocation0]]
  $region57: #{tpu_custom_call.1} parent=0
    _
  %s5 = ssub.s32 1, %s3
  %s6 = scalar_select 0, %s5, %s3
  $region1: #{tpu_custom_call.1} parent=0
    #allocation5 [shape = 'u8[8192]{0}', space=vmem, size = 0x2000, scoped, tag = 'input window, operand 0']
    #allocation6 [shape = 's32[2]{0}', space=sflag, size = 0x8, scoped, tag = 'scoped memory for tpu_custom_call.1']
    #allocation7 [shape = 'u8[8192]{0}', space=vmem, size = 0x2000, scoped, tag = 'input window, operand 1']
    #allocation8 [shape = 's32[2]{0}', space=sflag, size = 0x8, scoped, tag = 'scoped memory for tpu_custom_call.1']
    %7 = vsyncpa [#allocation6], 0
    %s8 = scalar_lea.sflag [#allocation6], 1
    %9 = vsyncpa %s8, 0
    %10 = vsyncpa [#allocation8], 0
    %s11 = scalar_lea.sflag [#allocation8], 1
    %12 = vsyncpa %s11, 0
    loop: start=0, step=1, limit=4
    $region2: #{tpu_custom_call.1} parent=1 // loop_pre_header
      _
    $region3: #{tpu_custom_call.1} parent=1 // loop_header
      %s14 = sphi 0, %s18
      %p15 = scmp.ge.s32.totalorder %s14, 4
      %s21 = sphi 0, %s33
      %s22 = sphi 0, %s29
      %s23 = sphi 0, %s21
      %s24 = sphi 0, %s22
      %s25 = sphi 0, %s23
      %s26 = sphi 0, %s24
      %s38 = sphi 0, %s40
      %s41 = sphi 0, %s38
      %s42 = sphi 0, %s41
      %s58 = sphi 0, %s42
      %s66 = sphi 0, %s68
      %s69 = sphi 0, %s66
      %s70 = sphi 0, %s69
      %s86 = sphi 0, %s70
      %s92 = sphi 0, %s94
      %s95 = sphi 0, %s92
      %s96 = sphi 0, %s95
      %s112 = sphi 0, %s96
    $region4: #{tpu_custom_call.1} parent=1 // loop_header_branch
      %17 = sbr.rel (%p15) target = $region8
    $region5: #{tpu_custom_call.1} parent=1 // loop_body
      %s19 = ssub.s32 %s14, 1
      %s20 = ssub.s32 %s14, 2
      %s27 = sadd.s32 1, %s22
      %p28 = scmp.ge.s32.totalorder %s27, 1
      %s29 = scalar_select %p28, 0, %s27
      %s30 = sadd.s32 1, %s21
      %s31 = scalar_select %p28, %s30, %s21
      %p32 = scmp.ge.s32.totalorder %s31, 2
      %s33 = scalar_select %p32, 0, %s31
      %s34 = ssub.s32 %s21, %s33
      %s35 = ssub.s32 %s22, %s29
      %s36 = sor.u32 %s34, %s35
      %p37 = scmp.eq.s32.totalorder %s36, 0
      %s39 = sadd.s32 %s38, 1
      %s40 = scalar_select %p37, %s38, %s39
      %p43 = pneg %p37
      %p44 = scmp.eq.s32.totalorder %s14, 1
      %p45 = por %p43, %p44
      %p46 = scmp.ne.s32.totalorder %s38, %s41
      %p47 = scmp.eq.s32.totalorder %s14, 0
      %p48 = por %p46, %p47
      %p49 = scmp.ne.s32.totalorder %s38, %s41
      %p50 = scmp.eq.s32.totalorder %s19, 1
      %p51 = por %p49, %p50
      %p52 = scmp.ne.s32.totalorder %s41, %s42
      %p53 = scmp.eq.s32.totalorder %s19, 0
      %p54 = por %p52, %p53
      %p55 = scmp.ne.s32.totalorder %s41, %s42
      %p56 = scmp.eq.s32.totalorder %s20, 1
      %p57 = por %p55, %p56
      %p59 = scmp.ne.s32.totalorder %s42, %s58
      %p60 = scmp.eq.s32.totalorder %s20, 0
      %p61 = por %p59, %p60
      %s62 = ssub.s32 %s21, %s33
      %s63 = ssub.s32 %s22, %s29
      %s64 = sor.u32 %s62, %s63
      %p65 = scmp.eq.s32.totalorder %s64, 0
      %s67 = sadd.s32 %s66, 1
      %s68 = scalar_select %p65, %s66, %s67
      %p71 = pneg %p65
      %p72 = scmp.eq.s32.totalorder %s14, 1
      %p73 = por %p71, %p72
      %p74 = scmp.ne.s32.totalorder %s66, %s69
      %p75 = scmp.eq.s32.totalorder %s14, 0
      %p76 = por %p74, %p75
      %p77 = scmp.ne.s32.totalorder %s66, %s69
      %p78 = scmp.eq.s32.totalorder %s19, 1
      %p79 = por %p77, %p78
      %p80 = scmp.ne.s32.totalorder %s69, %s70
      %p81 = scmp.eq.s32.totalorder %s19, 0
      %p82 = por %p80, %p81
      %p83 = scmp.ne.s32.totalorder %s69, %s70
      %p84 = scmp.eq.s32.totalorder %s20, 1
      %p85 = por %p83, %p84
      %p87 = scmp.ne.s32.totalorder %s70, %s86
      %p88 = scmp.eq.s32.totalorder %s20, 0
      %p89 = por %p87, %p88
      %s90 = ssub.s32 %s21, %s33
      %p91 = scmp.eq.s32.totalorder %s90, 0
      %s93 = sadd.s32 %s92, 1
      %s94 = scalar_select %p91, %s92, %s93
      %p97 = pneg %p91
      %p98 = scmp.eq.s32.totalorder %s14, 1
      %p99 = por %p97, %p98
      %p100 = scmp.ne.s32.totalorder %s92, %s95
      %p101 = scmp.eq.s32.totalorder %s14, 0
      %p102 = por %p100, %p101
      %p103 = scmp.ne.s32.totalorder %s92, %s95
      %p104 = scmp.eq.s32.totalorder %s19, 1
      %p105 = por %p103, %p104
      %p106 = scmp.ne.s32.totalorder %s95, %s96
      %p107 = scmp.eq.s32.totalorder %s19, 0
      %p108 = por %p106, %p107
      %p109 = scmp.ne.s32.totalorder %s95, %s96
      %p110 = scmp.eq.s32.totalorder %s20, 1
      %p111 = por %p109, %p110
      %p113 = scmp.ne.s32.totalorder %s96, %s112
      %p114 = scmp.eq.s32.totalorder %s20, 0
      %p115 = por %p113, %p114
      %p116 = scmp.le.s32.totalorder 1, %s14
      %p117 = scmp.lt.s32.totalorder %s14, 3
      %p118 = pnand %p116, %p117
      %p119 = pneg %p118
      // Predicated region
      $region9: #{tpu_custom_call.1} parent=5 // pred_check
        _
      $region10: #{tpu_custom_call.1} parent=5 // pred_check_branch
        %121 = sbr.rel (%p118) target = $region12
      $region11: #{tpu_custom_call.1} parent=5 // pred_region
        %s122 = ssub.s32 %s14, 1
      $region12: #{tpu_custom_call.1} parent=5 // pred_fallthru
        _
      %p123 = scmp.lt.s32.totalorder %s14, 2
      // Predicated region
      $region13: #{tpu_custom_call.1} parent=5 // pred_check
        %p124 = pneg %p123
      $region14: #{tpu_custom_call.1} parent=5 // pred_check_branch
        %126 = sbr.rel (%p124) target = $region16
      $region15: #{tpu_custom_call.1} parent=5 // pred_region
        // Predicated region
        $region17: #{tpu_custom_call.1} parent=15 // pred_check
          %p127 = pneg %p48
        $region18: #{tpu_custom_call.1} parent=15 // pred_check_branch
          %129 = sbr.rel (%p127) target = $region20
        $region19: #{tpu_custom_call.1} parent=15 // pred_region
          %s130 = sand.u32 %s38, 1
          %s131 = scalar_lea.sflag [#allocation6], %s130
          %s132 = sand.u32 %s38, 1
          %s133 = smul.addr %s132, 8
          %s134 = scalar_lea.vmem [#allocation5], %s133
          %s136 = ssub.s32 128, 128
          %137 = vsyncadd %s131, %s136
          %s138 = smul.addr %s21, 4
          %s139 = sadd.s32 %s22, %s138
          %s140 = smul.addr %s139, 32
          %s141 = scalar_lea.hbm %s0, %s140
          %s142 = sshll.u32 %s134, 4
          %s143 = int_to_ptr.vmem [resolvable:$true] %s142
          %148 = dma.hbm_to_vmem [thread:$0]  %s141, 128, %s143, %s131, 32, 32, 2
        $region20: #{tpu_custom_call.1} parent=15 // pred_fallthru
          _
        // Predicated region
        $region21: #{tpu_custom_call.1} parent=15 // pred_check
          %p149 = pneg %p76
        $region22: #{tpu_custom_call.1} parent=15 // pred_check_branch
          %151 = sbr.rel (%p149) target = $region24
        $region23: #{tpu_custom_call.1} parent=15 // pred_region
          %s152 = sand.u32 %s66, 1
          %s153 = scalar_lea.sflag [#allocation8], %s152
          %s154 = sand.u32 %s66, 1
          %s155 = smul.addr %s154, 8
          %s156 = scalar_lea.vmem [#allocation7], %s155
          %s158 = ssub.s32 128, 128
          %159 = vsyncadd %s153, %s158
          %s160 = smul.addr %s21, 4
          %s161 = sadd.s32 %s22, %s160
          %s162 = smul.addr %s161, 32
          %s163 = scalar_lea.hbm %s1, %s162
          %s164 = sshll.u32 %s156, 4
          %s165 = int_to_ptr.vmem [resolvable:$true] %s164
          %170 = dma.hbm_to_vmem [thread:$0]  %s163, 128, %s165, %s153, 32, 32, 2
        $region24: #{tpu_custom_call.1} parent=15 // pred_fallthru
          _
      $region16: #{tpu_custom_call.1} parent=5 // pred_fallthru
        _
      %p171 = scmp.le.s32.totalorder 1, %s14
      %p172 = scmp.lt.s32.totalorder %s14, 3
      %p173 = pnand %p171, %p172
      %p174 = pneg %p173
      // Predicated region
      $region25: #{tpu_custom_call.1} parent=5 // pred_check
        _
      $region26: #{tpu_custom_call.1} parent=5 // pred_check_branch
        %176 = sbr.rel (%p173) target = $region28
      $region27: #{tpu_custom_call.1} parent=5 // pred_region
        %s177 = ssub.s32 %s14, 1
        %s178 = sand.u32 %s41, 1
        %s179 = scalar_lea.sflag [#allocation6], %s178
        %s180 = sand.u32 %s41, 1
        %s181 = smul.addr %s180, 8
        %s182 = scalar_lea.vmem [#allocation5], %s181
        // Predicated region
        $region29: #{tpu_custom_call.1} parent=27 // pred_check
          %p183 = pneg %p54
        $region30: #{tpu_custom_call.1} parent=27 // pred_check_branch
          %185 = sbr.rel (%p183) target = $region32
        $region31: #{tpu_custom_call.1} parent=27 // pred_region
          %186 = dma.done %s179, 128
        $region32: #{tpu_custom_call.1} parent=27 // pred_fallthru
          _
        %s187 = sand.u32 %s69, 1
        %s188 = scalar_lea.sflag [#allocation8], %s187
        %s189 = sand.u32 %s69, 1
        %s190 = smul.addr %s189, 8
        %s191 = scalar_lea.vmem [#allocation7], %s190
        // Predicated region
        $region33: #{tpu_custom_call.1} parent=27 // pred_check
          %p192 = pneg %p82
        $region34: #{tpu_custom_call.1} parent=27 // pred_check_branch
          %194 = sbr.rel (%p192) target = $region36
        $region35: #{tpu_custom_call.1} parent=27 // pred_region
          %195 = dma.done %s188, 128
        $region36: #{tpu_custom_call.1} parent=27 // pred_fallthru
          _
        %s196 = sand.u32 %s41, 1
        %s197 = scalar_lea.sflag [#allocation6], %s196
        %s198 = sand.u32 %s41, 1
        %s199 = smul.addr %s198, 8
        %s200 = scalar_lea.vmem [#allocation5], %s199
        %p201 = pneg %p54
        %p202 = pneg %p51
        %s203 = sand.u32 %s69, 1
        %s204 = scalar_lea.sflag [#allocation8], %s203
        %s205 = sand.u32 %s69, 1
        %s206 = smul.addr %s205, 8
        %s207 = scalar_lea.vmem [#allocation7], %s206
        %p208 = pneg %p82
        %p209 = pneg %p79
        %p210 = pneg %p108
        %p211 = pneg %p105
        %p212 = scmp.lt.s32.totalorder %s23, 1
        %s213 = scalar_select %p212, %s23, 1
        %s214 = smul.addr %s213, 4
        %s215 = scalar_lea.vmem %s2, %s214
        %p216 = scmp.lt.s32.totalorder %s23, 1
        %s217 = scalar_select %p216, %s23, 1
        %s218 = smul.addr %s217, 4
        %s219 = scalar_lea.vmem %s2, %s218
        %p220 = scmp.eq.s32.totalorder %s24, 0
        // Predicated region
        $region37: #{tpu_custom_call.1} parent=27 // pred_check
          %p221 = pneg %p220
        $region38: #{tpu_custom_call.1} parent=27 // pred_check_branch
          %223 = sbr.rel (%p221) target = $region40
        $region39: #{tpu_custom_call.1} parent=27 // pred_region
          %224 = vst [vmem:[#allocation2] sm:$0x3] 0.0
          %225 = vst [vmem:[#allocation3] sm:$0x3] 0.0
          %226 = vst [vmem:[#allocation4] sm:$0x3] 0.0
        $region40: #{tpu_custom_call.1} parent=27 // pred_fallthru
          _
        %v227 = vld [vmem:[%s182] sm:$0x3]
        %s228 = scalar_lea.vmem %s182, 2 [#allocation5]
        %v229 = vld [vmem:[%s228] sm:$0x3]
        %v230 = vmax.f32 %v227, %v229
        %s231 = scalar_lea.vmem %s182, 4 [#allocation5]
        %v232 = vld [vmem:[%s231] sm:$0x3]
        %v233 = vmax.f32 %v230, %v232
        %s234 = scalar_lea.vmem %s182, 6 [#allocation5]
        %v235 = vld [vmem:[%s234] sm:$0x3]
        %v236 = vmax.f32 %v233, %v235
        %v237 = vsub.f32 %v227, %v236
        %v238 = vmul.f32 %v237, 1.442695
        %v239 = vpow.pop %v238
        %v240 = vsub.f32 %v229, %v236
        %v241 = vmul.f32 %v240, 1.442695
        %v242 = vpow.pop %v241
        %v243 = vadd.f32 %v239, %v242
        %v244 = vsub.f32 %v232, %v236
        %v245 = vmul.f32 %v244, 1.442695
        %v246 = vpow.pop %v245
        %v247 = vadd.f32 %v243, %v246
        %v248 = vsub.f32 %v235, %v236
        %v249 = vmul.f32 %v248, 1.442695
        %v250 = vpow.pop %v249
        %v251 = vadd.f32 %v247, %v250
        %v252 = vlog2.pop %v251
        %v253 = vmul.f32 %v252, 0.6931472
        %v254 = vadd.f32 %v236, %v253
        %v255 = vadd.f32 %v254, -0.6931472
        %vm256 = vcmp.gt.f32.partialorder %v227, %v255
        %v257 = vsel %vm256, 1, 0
        %v258 = vcvt.s32.f32 %v257
        %v259 = vld [vmem:[%s191] sm:$0x3]
        %vm260 = vcmp.eq.f32.partialorder %v259, 1.0
        %v261 = vsel %vm260, 1, 0
        %v262 = vcvt.s32.f32 %v261
        %v263 = vadd.f32 %v258, 0.0
        %v264 = vadd.f32 %v262, 0.0
        %v265 = vmul.f32 %v258, %v262
        %v266 = vadd.f32 %v265, 0.0
        %vm267 = vcmp.gt.f32.partialorder %v229, %v255
        %v268 = vsel %vm267, 1, 0
        %v269 = vcvt.s32.f32 %v268
        %s270 = scalar_lea.vmem %s191, 2 [#allocation7]
        %v271 = vld [vmem:[%s270] sm:$0x3]
        %vm272 = vcmp.eq.f32.partialorder %v271, 1.0
        %v273 = vsel %vm272, 1, 0
        %v274 = vcvt.s32.f32 %v273
        %v275 = vadd.f32 %v263, %v269
        %v276 = vadd.f32 %v264, %v274
        %v277 = vmul.f32 %v269, %v274
        %v278 = vadd.f32 %v266, %v277
        %vm279 = vcmp.gt.f32.partialorder %v232, %v255
        %v280 = vsel %vm279, 1, 0
        %v281 = vcvt.s32.f32 %v280
        %s282 = scalar_lea.vmem %s191, 4 [#allocation7]
        %v283 = vld [vmem:[%s282] sm:$0x3]
        %vm284 = vcmp.eq.f32.partialorder %v283, 1.0
        %v285 = vsel %vm284, 1, 0
        %v286 = vcvt.s32.f32 %v285
        %v287 = vadd.f32 %v275, %v281
        %v288 = vadd.f32 %v276, %v286
        %v289 = vmul.f32 %v281, %v286
        %v290 = vadd.f32 %v278, %v289
        %vm291 = vcmp.gt.f32.partialorder %v235, %v255
        %v292 = vsel %vm291, 1, 0
        %v293 = vcvt.s32.f32 %v292
        %s294 = scalar_lea.vmem %s191, 6 [#allocation7]
        %v295 = vld [vmem:[%s294] sm:$0x3]
        %vm296 = vcmp.eq.f32.partialorder %v295, 1.0
        %v297 = vsel %vm296, 1, 0
        %v298 = vcvt.s32.f32 %v297
        %v299 = vadd.f32 %v287, %v293
        %v300 = vadd.f32 %v288, %v298
        %v301 = vmul.f32 %v293, %v298
        %v302 = vadd.f32 %v290, %v301
        %v303 = vld [vmem:[#allocation2] sm:$0x3]
        %v304 = vadd.f32 %v303, %v302
        %305 = vst [vmem:[#allocation2] sm:$0x3] %v304
        %v306 = vld [vmem:[#allocation3] sm:$0x3]
        %v307 = vadd.f32 %v306, %v299
        %308 = vst [vmem:[#allocation3] sm:$0x3] %v307
        %v309 = vld [vmem:[#allocation4] sm:$0x3]
        %v310 = vadd.f32 %v309, %v300
        %311 = vst [vmem:[#allocation4] sm:$0x3] %v310
        // Predicated region
        $region41: #{tpu_custom_call.1} parent=27 // pred_check
          %p312 = pneg %p220
        $region42: #{tpu_custom_call.1} parent=27 // pred_check_branch
          %314 = sbr.rel (%p312) target = $region44
        $region43: #{tpu_custom_call.1} parent=27 // pred_region
          %v315 = vld [vmem:[#allocation2] sm:$0x3]
          %vm316 = vcmask 1041408
          %v317 = vsel %vm316, %v315, 0.0
          %v318 = vrot.slane %v317, 4
          %v319 = vadd.f32 %v317, %v318
          %v320 = vrot.slane %v319, 2
          %v321 = vadd.f32 %v319, %v320
          %v322 = vrot.slane %v321, 1
          %v323 = vadd.f32 %v321, %v322
          %324 = vst [vmem:[%s219] sm:$0x1] %v323
          %v325 = vld [vmem:[#allocation3] sm:$0x3]
          %v326 = vsel %vm316, %v325, 0.0
          %v327 = vrot.slane %v326, 4
          %v328 = vadd.f32 %v326, %v327
          %v329 = vrot.slane %v328, 2
          %v330 = vadd.f32 %v328, %v329
          %v331 = vrot.slane %v330, 1
          %v332 = vadd.f32 %v330, %v331
          %333 = vst [vmem:[%s219 + $0x1] sm:$0x1] %v332
          %v334 = vld [vmem:[#allocation4] sm:$0x3]
          %v335 = vsel %vm316, %v334, 0.0
          %v336 = vrot.slane %v335, 4
          %v337 = vadd.f32 %v335, %v336
          %v338 = vrot.slane %v337, 2
          %v339 = vadd.f32 %v337, %v338
          %v340 = vrot.slane %v339, 1
          %v341 = vadd.f32 %v339, %v340
          %342 = vst [vmem:[%s219 + $0x2] sm:$0x1] %v341
        $region44: #{tpu_custom_call.1} parent=27 // pred_fallthru
          _
        %p343 = scmp.lt.s32.totalorder %s23, 1
        %s344 = scalar_select %p343, %s23, 1
        %s345 = smul.addr %s344, 4
        %s346 = scalar_lea.vmem %s2, %s345
        // Predicated region
        $region45: #{tpu_custom_call.1} parent=27 // pred_check
          %p347 = pneg %p105
        $region46: #{tpu_custom_call.1} parent=27 // pred_check_branch
          %349 = sbr.rel (%p347) target = $region48
        $region47: #{tpu_custom_call.1} parent=27 // pred_region
          _
        $region48: #{tpu_custom_call.1} parent=27 // pred_fallthru
          _
      $region28: #{tpu_custom_call.1} parent=5 // pred_fallthru
        _
      %p350 = scmp.le.s32.totalorder 2, %s14
      // Predicated region
      $region49: #{tpu_custom_call.1} parent=5 // pred_check
        %p351 = pneg %p350
      $region50: #{tpu_custom_call.1} parent=5 // pred_check_branch
        %353 = sbr.rel (%p351) target = $region52
      $region51: #{tpu_custom_call.1} parent=5 // pred_region
        %s354 = ssub.s32 %s14, 2
        // Predicated region
        $region53: #{tpu_custom_call.1} parent=51 // pred_check
          %p355 = pneg %p111
        $region54: #{tpu_custom_call.1} parent=51 // pred_check_branch
          %357 = sbr.rel (%p355) target = $region56
        $region55: #{tpu_custom_call.1} parent=51 // pred_region
          %p358 = scmp.lt.s32.totalorder %s25, 1
          %s359 = scalar_select %p358, %s25, 1
          %s360 = smul.addr %s359, 4
          %s361 = scalar_lea.vmem %s2, %s360
        $region56: #{tpu_custom_call.1} parent=51 // pred_fallthru
          _
      $region52: #{tpu_custom_call.1} parent=5 // pred_fallthru
        _
    $region6: #{tpu_custom_call.1} parent=1 // loop_footer
      %s18 = sadd.s32 1, %s14
    $region7: #{tpu_custom_call.1} parent=1 // loop_footer_branch
      %13 = sbr.rel target = $region3
    $region8: #{tpu_custom_call.1} parent=1 // loop_exit
      _
    %362 = vsyncpa [#allocation6], 1
    %s363 = scalar_lea.sflag [#allocation6], 1
    %364 = vsyncpa %s363, 1
    %365 = vsyncpa [#allocation8], 1
    %s366 = scalar_lea.sflag [#allocation8], 1
    %367 = vsyncpa %s366, 1

</llo_original>
